<compile_context>
chip_gen: v5e
topology: v5e:2x2
jax: 0.10.0
libtpu: 0.0.40
codegen_flags: <defaults>
</compile_context>

<pallas_src>
import functools

import jax
import jax.numpy as jnp
from jax.experimental import pallas as pl
from jax.experimental.pallas import tpu as pltpu

_MIB = 1024 * 1024


def _round_up(x, m):
    return (x + m - 1) // m * m


@functools.lru_cache(maxsize=None)
def _vmem_limit_bytes():
    """~75% of physical VMEM, capped: v5e/v6e (128 MiB) -> 96 MiB, v7x -> 48 MiB."""
    cap = 128 * _MIB
    try:
        info = pltpu.get_tpu_info()
        cap = int(getattr(info, "vmem_capacity_bytes", cap))
    except Exception:
        pass
    return max(32 * _MIB, min(96 * _MIB, (cap * 3) // 4))


def _cparams(dims):
    return pltpu.CompilerParams(dimension_semantics=dims,
                                vmem_limit_bytes=_vmem_limit_bytes())


def _pick_tile(total, unit, cap):
    """Largest multiple of `unit` that divides `total` and is <= cap."""
    best = unit
    t = unit
    while t <= min(total, cap):
        if total % t == 0:
            best = t
        t += unit
    return best


# ----------------------------------------------------------------------------
# Pallas kernels
# ----------------------------------------------------------------------------

def _weight_std_kernel(w_ref, o_ref):
    """Weight standardization (StdConv2d): per output channel (= per column),
    biased variance, eps=1e-5.  w_ref: [K, Cout] f32 -> o_ref bf16."""
    w = w_ref[...].astype(jnp.float32)
    m = jnp.mean(w, axis=0, keepdims=True)
    v = jnp.mean(w * w, axis=0, keepdims=True) - m * m
    o_ref[...] = ((w - m) * jax.lax.rsqrt(v + 1e-5)).astype(o_ref.dtype)


def _matmul_kernel(a_ref, b_ref, o_ref):
    """Tiled matmul: bf16 inputs, accumulate directly into the resident f32
    output block over the K ('arbitrary') grid axis."""
    @pl.when(pl.program_id(2) == 0)
    def _():
        o_ref[...] = jnp.zeros_like(o_ref)

    o_ref[...] += jnp.dot(a_ref[...], b_ref[...],
                          preferred_element_type=jnp.float32)


def _conv3x3_s1_kernel(x_ref, w_ref, o_ref, *, wp, tmo, kw):
    """3x3 stride-1 pad-1 conv as shift-and-accumulate.

    The zero-padded image (flattened to rows of width Wp) stays resident in
    VMEM for the whole sample; tap k = (di, dj) is a constant row offset
    di*Wp + dj, so the conv is 9 shifted [tmo, Cin] @ [Cin, tn] matmuls that
    accumulate into the same f32 output block (no im2col replication)."""
    k = pl.program_id(3)

    @pl.when(k == 0)
    def _():
        o_ref[...] = jnp.zeros_like(o_ref)

    off = pl.program_id(1) * tmo + (k // kw) * wp + (k % kw)
    a = x_ref[0, pl.ds(off, tmo), :]                       # [tmo, Cin] bf16
    o_ref[0] += jnp.dot(a, w_ref[0], preferred_element_type=jnp.float32)


def _gn_stats_kernel(*refs, eps, inv_cnt, per_channel):
    """GroupNorm pass 1: accumulate per-channel sum / sumsq over HW tiles,
    then (at the last tile) fold the group statistics and the affine into a
    per-channel scale/shift pair.  Group reduce = tiny selector matmuls
    (sel and sel^T are both passed in, no in-kernel transpose)."""
    i = 0
    x_ref = refs[i]; i += 1
    sel_ref = selt_ref = None
    if not per_channel:
        sel_ref, selt_ref = refs[i], refs[i + 1]; i += 2
    w_ref, b_ref, o_ref, acc_ref = refs[i], refs[i + 1], refs[i + 2], refs[i + 3]

    t = pl.program_id(1)

    @pl.when(t == 0)
    def _():
        acc_ref[...] = jnp.zeros_like(acc_ref)

    x = x_ref[0].astype(jnp.float32)                       # [thw, C]
    acc_ref[0:1, :] += jnp.sum(x, axis=0, keepdims=True)
    acc_ref[1:2, :] += jnp.sum(x * x, axis=0, keepdims=True)

    @pl.when(t == pl.num_programs(1) - 1)
    def _():
        s1c = acc_ref[0:1, :]
        s2c = acc_ref[1:2, :]
        if per_channel:
            mean = s1c * inv_cnt
            var = s2c * inv_cnt - mean * mean
        else:
            sel = sel_ref[...]                             # [C, G] one-hot
            s1g = jnp.dot(s1c, sel, preferred_element_type=jnp.float32)
            s2g = jnp.dot(s2c, sel, preferred_element_type=jnp.float32)
            mg = s1g * inv_cnt
            vg = s2g * inv_cnt - mg * mg
            mean = jnp.dot(mg, selt_ref[...], preferred_element_type=jnp.float32)
            var = jnp.dot(vg, selt_ref[...], preferred_element_type=jnp.float32)
        rstd = jax.lax.rsqrt(var + eps)
        scale = rstd * w_ref[...]
        shift = b_ref[...] - mean * scale
        o_ref[0, 0:1, :] = scale
        o_ref[0, 1:2, :] = shift


def _gn_apply_kernel(*refs, relu, has_res):
    """GroupNorm pass 2: y = x*scale + shift (+ residual) (ReLU), bf16 out."""
    i = 0
    x_ref = refs[i]; i += 1
    st_ref = refs[i]; i += 1
    res_ref = None
    if has_res:
        res_ref = refs[i]; i += 1
    o_ref = refs[i]

    x = x_ref[0].astype(jnp.float32)                       # [thw, C]
    y = x * st_ref[0, 0:1, :] + st_ref[0, 1:2, :]
    if has_res:
        y = y + res_ref[0].astype(jnp.float32)
    if relu:
        y = jnp.maximum(y, 0.0)
    o_ref[0] = y.astype(o_ref.dtype)


# ----------------------------------------------------------------------------
# Matmul / conv wrappers
# ----------------------------------------------------------------------------

def _tiled_matmul(a, b_p, cout):
    """a [M, K] bf16, b_p [Kp, Np] standardized+padded bf16 -> [M, cout] f32."""
    a = a.astype(jnp.bfloat16)
    M, K = a.shape
    Kp, Np = b_p.shape

    if Kp > K:
        a = jnp.pad(a, ((0, 0), (0, Kp - K)))

    nmt = pl.cdiv(M, 512)
    tm = _round_up(pl.cdiv(M, nmt), 8)
    Mp = tm * nmt
    if Mp > M:
        a = jnp.pad(a, ((0, Mp - M), (0, 0)))

    tk = _pick_tile(Kp, 256, 2304) if Kp % 256 == 0 else _pick_tile(Kp, 128, 2304)
    tn = _pick_tile(Np, 256, 512) if Np % 256 == 0 else _pick_tile(Np, 128, 512)
    # v7x has two TensorCores: keep >=2 blocks on a parallel axis when possible.
    if Mp // tm == 1 and Np // tn == 1 and tn >= 256:
        tn //= 2

    grid = (Mp // tm, Np // tn, Kp // tk)
    out = pl.pallas_call(
        _matmul_kernel,
        out_shape=jax.ShapeDtypeStruct((Mp, Np), jnp.float32),
        grid_spec=pltpu.PrefetchScalarGridSpec(
            num_scalar_prefetch=0,
            grid=grid,
            in_specs=[pl.BlockSpec((tm, tk), lambda i, j, k: (i, k)),
                      pl.BlockSpec((tk, tn), lambda i, j, k: (k, j))],
            out_specs=pl.BlockSpec((tm, tn), lambda i, j, k: (i, j))),
        compiler_params=_cparams(("parallel", "parallel", "arbitrary")),
        cost_estimate=pl.CostEstimate(
            flops=2 * Mp * Kp * Np,
            transcendentals=0,
            bytes_accessed=Mp * Kp * 2 + Kp * Np * 2 + Mp * Np * 4),
    )(a, b_p)
    return out[:M, :cout]


def _conv3x3_s1(x, wtaps, cout):
    """3x3 stride-1 pad-1 StdConv via in-kernel shift-and-accumulate.

    x: [N, H, W, Cin] bf16; wtaps: [9, Cin, Np] standardized bf16."""
    x = x.astype(jnp.bfloat16)
    N, H, W, Cin = x.shape
    khkw, _, Np = wtaps.shape
    Wp, Hp = W + 2, H + 2

    M = H * Wp                       # valid output rows live in [0, M)
    nmt = pl.cdiv(M, 1024)
    tmo = _round_up(pl.cdiv(M, nmt), 8)
    Mp = tmo * nmt
    rows_in = _round_up(Mp + 2 * Wp + 2, 8)

    xp = jnp.pad(x, ((0, 0), (1, 1), (1, 1), (0, 0))).reshape(N, Hp * Wp, Cin)
    xp = jnp.pad(xp, ((0, 0), (0, rows_in - Hp * Wp), (0, 0)))

    tn = _pick_tile(Np, 256, 512) if Np % 256 == 0 else _pick_tile(Np, 128, 512)

    kernel = functools.partial(_conv3x3_s1_kernel, wp=Wp, tmo=tmo, kw=3)
    out = pl.pallas_call(
        kernel,
        out_shape=jax.ShapeDtypeStruct((N, Mp, Np), jnp.float32),
        grid_spec=pltpu.PrefetchScalarGridSpec(
            num_scalar_prefetch=0,
            grid=(N, nmt, Np // tn, khkw),
            in_specs=[pl.BlockSpec((1, rows_in, Cin),
                                   lambda n, i, j, k: (n, 0, 0)),
                      pl.BlockSpec((1, Cin, tn),
                                   lambda n, i, j, k: (k, 0, j))],
            out_specs=pl.BlockSpec((1, tmo, tn),
                                   lambda n, i, j, k: (n, i, j))),
        compiler_params=_cparams(("parallel", "parallel", "parallel",
                                  "arbitrary")),
        cost_estimate=pl.CostEstimate(
            flops=2 * N * Mp * Cin * khkw * Np,
            transcendentals=0,
            bytes_accessed=N * (rows_in * Cin * 2 + Mp * Np * 4)
                           + khkw * Cin * Np * 2),
    )(xp, wtaps)
    out = out[:, :M, :].reshape(N, H, Wp, Np)[:, :, :W, :cout]
    return out


def ws_conv2d(x, wprep):
    """Standardized conv on NHWC bf16 input using prepared weights -> f32 NHWC."""
    kh, kw = wprep["kh"], wprep["kw"]
    stride, padding, cout = wprep["stride"], wprep["padding"], wprep["cout"]
    N, H, W, Cin = x.shape

    if kh == 1 and kw == 1:
        # TODO(synk): fold the stride-2 row/col selection into the preceding
        # GN apply kernel's output write instead of this host-side slice.
        xs = x[:, ::stride, ::stride, :] if stride > 1 else x
        Ho, Wo = xs.shape[1], xs.shape[2]
        a = xs.reshape(N * Ho * Wo, Cin)
        out = _tiled_matmul(a, wprep["wmat"], cout)
        return out.reshape(N, Ho, Wo, cout)

    if kh == 3 and kw == 3 and stride == 1 and padding == 1:
        return _conv3x3_s1(x, wprep["wtaps"], cout)

    # TODO(synk): strided (stride=2) 3x3/7x7 convs still use host-side im2col;
    # an in-kernel polyphase/strided gather would remove the KH*KW activation
    # replication for these too (one conv per stage + the 3-channel root).
    xp = jnp.pad(x, ((0, 0), (padding, padding), (padding, padding), (0, 0)))
    Hp, Wp = xp.shape[1], xp.shape[2]
    Ho = (Hp - kh) // stride + 1
    Wo = (Wp - kw) // stride + 1
    cols = []
    for i in range(kh):
        for j in range(kw):
            cols.append(xp[:, i:i + stride * Ho:stride,
                           j:j + stride * Wo:stride, :])
    patches = jnp.stack(cols, axis=-1)                     # [N,Ho,Wo,Cin,KH*KW]
    a = patches.reshape(N * Ho * Wo, Cin * kh * kw)
    out = _tiled_matmul(a, wprep["wmat"], cout)
    return out.reshape(N, Ho, Wo, cout)


# ----------------------------------------------------------------------------
# GroupNorm wrapper (two HW-tiled passes, bf16 output)
# ----------------------------------------------------------------------------

_MAX_GN_ROWS = 2048


def _pick_hw_tile(hw):
    if hw <= _MAX_GN_ROWS:
        return hw, hw
    best = 0
    t = 8
    while t <= _MAX_GN_ROWS:
        if hw % t == 0:
            best = t
        t += 8
    if best >= 8:
        return best, hw
    return _MAX_GN_ROWS, _round_up(hw, _MAX_GN_ROWS)


def group_norm(x, gn, *, relu=False, residual=None):
    """GroupNorm (+ optional fused residual add and ReLU) on NHWC input.

    Pass 1 folds per-group stats and the affine into per-channel scale/shift;
    pass 2 normalizes, adds the residual, applies ReLU and emits bf16 that
    feeds the next conv directly.  Both passes are tiled over HW so VMEM stays
    bounded at large resolutions (v7x has only 64 MiB physical)."""
    N, H, W, C = x.shape
    groups, eps = gn["groups"], gn["eps"]
    per_channel = groups == C
    has_res = residual is not None
    HW = H * W
    thw, HWp = _pick_hw_tile(HW)
    T = HWp // thw

    xr = x.reshape(N, HW, C)
    if HWp != HW:
        xr = jnp.pad(xr, ((0, 0), (0, HWp - HW), (0, 0)))
    inv_cnt = 1.0 / float(HW * (C // groups))

    # Pass 1: per-sample scale/shift.
    s_inputs = [xr]
    s_specs = [pl.BlockSpec((1, thw, C), lambda n, t: (n, t, 0))]
    if not per_channel:
        s_inputs += [gn["sel"], gn["selT"]]
        s_specs += [pl.BlockSpec((C, groups), lambda n, t: (0, 0)),
                    pl.BlockSpec((groups, C), lambda n, t: (0, 0))]
    s_inputs += [gn["w"], gn["b"]]
    s_specs += [pl.BlockSpec((1, C), lambda n, t: (0, 0)),
                pl.BlockSpec((1, C), lambda n, t: (0, 0))]
    stats = pl.pallas_call(
        functools.partial(_gn_stats_kernel, eps=eps, inv_cnt=inv_cnt,
                          per_channel=per_channel),
        grid=(N, T),
        in_specs=s_specs,
        out_specs=pl.BlockSpec((1, 2, C), lambda n, t: (n, 0, 0)),
        out_shape=jax.ShapeDtypeStruct((N, 2, C), jnp.float32),
        scratch_shapes=[pltpu.VMEM((2, C), jnp.float32)],
        compiler_params=_cparams(("parallel", "arbitrary")),
    )(*s_inputs)

    # Pass 2: normalize + affine (+ residual, ReLU) -> bf16.
    # TODO(synk): make small-C layers lane-dense (process [HW, C] as
    # [HW/k, k*C]) so stores are unmasked full-lane vst.
    a_inputs = [xr, stats]
    a_specs = [pl.BlockSpec((1, thw, C), lambda n, t: (n, t, 0)),
               pl.BlockSpec((1, 2, C), lambda n, t: (n, 0, 0))]
    if has_res:
        rr = residual.reshape(N, HW, C)
        if HWp != HW:
            rr = jnp.pad(rr, ((0, 0), (0, HWp - HW), (0, 0)))
        a_inputs.append(rr)
        a_specs.append(pl.BlockSpec((1, thw, C), lambda n, t: (n, t, 0)))
    out = pl.pallas_call(
        functools.partial(_gn_apply_kernel, relu=relu, has_res=has_res),
        grid=(N, T),
        in_specs=a_specs,
        out_specs=pl.BlockSpec((1, thw, C), lambda n, t: (n, t, 0)),
        out_shape=jax.ShapeDtypeStruct((N, HWp, C), jnp.bfloat16),
        compiler_params=_cparams(("parallel", "parallel")),
    )(*a_inputs)
    if HWp != HW:
        out = out[:, :HW, :]
    return out.reshape(N, H, W, C)


def max_pool_3x3_s2(x):
    # TODO(synk): MaxPool2d kept as plain-JAX reduce_window glue (tiny op).
    return jax.lax.reduce_window(x, jnp.array(-jnp.inf, x.dtype), jax.lax.max,
                                 (1, 3, 3, 1), (1, 2, 2, 1), "VALID")


# ----------------------------------------------------------------------------
# Deterministic parameter construction (shapes per ResNetV2.__init__)
# ----------------------------------------------------------------------------

def _conv_w(key, cout, cin, kh, kw):
    return 0.1 * jax.random.normal(key, (cout, cin, kh, kw), jnp.float32)


def _gn_p(key, c):
    k1, k2 = jax.random.split(key)
    w = 1.0 + 0.1 * jax.random.normal(k1, (c,), jnp.float32)
    b = 0.1 * jax.random.normal(k2, (c,), jnp.float32)
    return w, b


def _init_bottleneck(key, cin, cout, cmid, stride):
    keys = jax.random.split(key, 8)
    p = {
        "conv1": _conv_w(keys[0], cmid, cin, 1, 1),
        "gn1": _gn_p(keys[1], cmid),
        "conv2": _conv_w(keys[2], cmid, cmid, 3, 3),
        "gn2": _gn_p(keys[3], cmid),
        "conv3": _conv_w(keys[4], cout, cmid, 1, 1),
        "gn3": _gn_p(keys[5], cout),
        "stride": stride,
        "downsample": (stride != 1 or cin != cout),
    }
    if p["downsample"]:
        p["down_conv"] = _conv_w(keys[6], cout, cin, 1, 1)
        p["gn_proj"] = _gn_p(keys[7], cout)
    return p


def init_resnetv2_params(key, block_units, width_factor):
    width = int(64 * width_factor)
    keys = jax.random.split(key, 2 + len(block_units))
    params = {
        "width": width,
        "root_conv": _conv_w(keys[0], width, 3, 7, 7),
        "root_gn": _gn_p(keys[1], width),
    }
    specs = [
        (width, width * 4, width, 1),
        (width * 4, width * 8, width * 2, 2),
        (width * 8, width * 16, width * 4, 2),
    ]
    blocks = []
    for bi, (cin, cout, cmid, stride) in enumerate(specs):
        ukeys = jax.random.split(keys[2 + bi], block_units[bi])
        units = [_init_bottleneck(ukeys[0], cin, cout, cmid, stride)]
        for u in range(1, block_units[bi]):
            units.append(_init_bottleneck(ukeys[u], cout, cout, cmid, 1))
        blocks.append(units)
    params["blocks"] = blocks
    return params


# ----------------------------------------------------------------------------
# One-time weight preparation (standardize, transpose, zero-pad to bf16)
# ----------------------------------------------------------------------------

def _prep_conv(weight, stride, padding):
    cout, cin, kh, kw = weight.shape
    k = cin * kh * kw
    kp = _round_up(k, 128)
    npad = _round_up(cout, 128)
    wmat = weight.reshape(cout, k).T                       # [K, Cout] f32
    w_std = pl.pallas_call(
        _weight_std_kernel,
        out_shape=jax.ShapeDtypeStruct((k, cout), jnp.bfloat16),
    )(wmat)
    prep = {"cout": cout, "cin": cin, "kh": kh, "kw": kw,
            "stride": stride, "padding": padding}
    if kh == 3 and kw == 3 and stride == 1 and padding == 1:
        wt = w_std.reshape(cin, kh * kw, cout).transpose(1, 0, 2)  # [9,Cin,Cout]
        prep["wtaps"] = jnp.pad(wt, ((0, 0), (0, 0), (0, npad - cout)))
    else:
        prep["wmat"] = jnp.pad(w_std, ((0, kp - k), (0, npad - cout)))
    return prep


def _prep_gn(w, b, groups, eps):
    c = w.shape[0]
    gn = {"groups": groups, "eps": eps,
          "w": w.reshape(1, c).astype(jnp.float32),
          "b": b.reshape(1, c).astype(jnp.float32)}
    if groups != c:
        sel = (jnp.arange(c)[:, None] // (c // groups)
               == jnp.arange(groups)[None, :]).astype(jnp.float32)   # [C, G]
        gn["sel"] = sel
        gn["selT"] = sel.T
    return gn


def prepare_resnetv2(params):
    prep = {"width": params["width"],
            "root_conv": _prep_conv(params["root_conv"], 2, 3),
            "root_gn": _prep_gn(*params["root_gn"], groups=32, eps=1e-6)}
    blocks = []
    for block in params["blocks"]:
        units = []
        for u in block:
            stride = u["stride"]
            pu = {"downsample": u["downsample"],
                  "conv1": _prep_conv(u["conv1"], 1, 0),
                  "gn1": _prep_gn(*u["gn1"], groups=32, eps=1e-6),
                  "conv2": _prep_conv(u["conv2"], stride, 1),
                  "gn2": _prep_gn(*u["gn2"], groups=32, eps=1e-6),
                  "conv3": _prep_conv(u["conv3"], 1, 0),
                  "gn3": _prep_gn(*u["gn3"], groups=32, eps=1e-6)}
            if u["downsample"]:
                cout = u["down_conv"].shape[0]
                pu["down_conv"] = _prep_conv(u["down_conv"], stride, 0)
                pu["gn_proj"] = _prep_gn(*u["gn_proj"], groups=cout, eps=1e-5)
            units.append(pu)
        blocks.append(units)
    prep["blocks"] = blocks
    return prep


# ----------------------------------------------------------------------------
# Forward pass (semantics of ResNetV2.forward), channels-last internally
# ----------------------------------------------------------------------------

def preact_bottleneck_forward(p, x):
    if p["downsample"]:
        residual = ws_conv2d(x, p["down_conv"])
        residual = group_norm(residual, p["gn_proj"], relu=False)
    else:
        residual = x
    y = ws_conv2d(x, p["conv1"])
    y = group_norm(y, p["gn1"], relu=True)
    y = ws_conv2d(y, p["conv2"])
    y = group_norm(y, p["gn2"], relu=True)
    y = ws_conv2d(y, p["conv3"])
    # relu(residual + gn3(conv3(y))) fused in the GN apply kernel
    y = group_norm(y, p["gn3"], relu=True, residual=residual)
    return y


def resnetv2_forward(prep, x_nchw, return_features=True):
    features = []
    b, _, in_size, _ = x_nchw.shape
    # single NCHW->NHWC layout conversion; bf16 activations feed the MXU.
    x = x_nchw.transpose(0, 2, 3, 1).astype(jnp.bfloat16)

    # root: StdConv2d(3, width, 7, stride=2, pad=3) -> GN(32) -> ReLU
    y = ws_conv2d(x, prep["root_conv"])
    y = group_norm(y, prep["root_gn"], relu=True)
    features.append(y)

    y = max_pool_3x3_s2(y)

    blocks = prep["blocks"]
    for i in range(len(blocks) - 1):
        for unit in blocks[i]:
            y = preact_bottleneck_forward(unit, y)
        right_size = int(in_size / 4 / (i + 1))
        if y.shape[1] != right_size:
            pad = right_size - y.shape[1]
            assert 0 < pad < 3, f"x {y.shape} should {right_size}"
            feat = jnp.zeros((b, right_size, right_size, y.shape[3]), y.dtype)
            feat = feat.at[:, :y.shape[1], :y.shape[2], :].set(y)
        else:
            feat = y
        features.append(feat)

    for unit in blocks[-1]:
        y = preact_bottleneck_forward(unit, y)

    out = y.transpose(0, 3, 1, 2).astype(jnp.float32)       # back to NCHW f32
    feats = [f.transpose(0, 3, 1, 2).astype(jnp.float32)
             for f in features[::-1]]
    if return_features:
        return out, feats
    return out


# ----------------------------------------------------------------------------

if __name__ == "__main__":
    key = jax.random.PRNGKey(0)
    kp, kx = jax.random.split(key)

    block_units = [1, 1, 1]      # one PreActBottleneck per stage (small config)
    width_factor = 0.5           # width = 32 (min divisible by 32 for GroupNorm)

    params = init_resnetv2_params(kp, block_units, width_factor)
    prep = prepare_resnetv2(params)          # standardize/pad weights ONCE
    x = jax.random.normal(kx, (2, 3, 32, 32), jnp.float32)   # NCHW input

    fwd = jax.jit(functools.partial(resnetv2_forward, prep))
    out, feats = fwd(x)
    out = jax.block_until_ready(out)
    for f in feats:
        jax.block_until_ready(f)

    # sanity: expected shapes for in_size=32, width=32
    assert out.shape == (2, 512, 2, 2), out.shape
    assert feats[0].shape == (2, 256, 4, 4), feats[0].shape
    assert feats[1].shape == (2, 128, 8, 8), feats[1].shape
    assert feats[2].shape == (2, 32, 16, 16), feats[2].shape

    print("KERNEL_OK")
</pallas_src>

<mosaic_0001>
module attributes {stable_mosaic.version = 11 : i64} {
  func.func @_weight_std_kernel(%arg0: memref<147x32xf32, #tpu.memory_space<vmem>>, %arg1: memref<147x32xbf16, #tpu.memory_space<vmem>>) attributes {dimension_semantics = [], scalar_prefetch = 0 : i64, scratch_operands = 0 : i64, tpu.core_type = #tpu.core_type<tc>} {
    %c0 = arith.constant 0 : index
    %c0_0 = arith.constant 0 : index
    %0 = vector.load %arg0[%c0, %c0_0] : memref<147x32xf32, #tpu.memory_space<vmem>>, vector<147x32xf32>
    %cst = arith.constant dense<0.000000e+00> : vector<32xf32>
    %1 = vector.multi_reduction <add>, %0, %cst [0] : vector<147x32xf32> to vector<32xf32>
    %2 = vector.shape_cast %1 : vector<32xf32> to vector<1x32xf32>
    %cst_1 = arith.constant 1.470000e+02 : f32
    %3 = vector.broadcast %cst_1 : f32 to vector<1x32xf32>
    %4 = arith.divf %2, %3 : vector<1x32xf32>
    %5 = arith.mulf %0, %0 : vector<147x32xf32>
    %cst_2 = arith.constant dense<0.000000e+00> : vector<32xf32>
    %6 = vector.multi_reduction <add>, %5, %cst_2 [0] : vector<147x32xf32> to vector<32xf32>
    %7 = vector.shape_cast %6 : vector<32xf32> to vector<1x32xf32>
    %cst_3 = arith.constant 1.470000e+02 : f32
    %8 = vector.broadcast %cst_3 : f32 to vector<1x32xf32>
    %9 = arith.divf %7, %8 : vector<1x32xf32>
    %10 = arith.mulf %4, %4 : vector<1x32xf32>
    %11 = arith.subf %9, %10 : vector<1x32xf32>
    %12 = vector.broadcast %4 : vector<1x32xf32> to vector<147x32xf32>
    %13 = arith.subf %0, %12 : vector<147x32xf32>
    %cst_4 = arith.constant 9.99999974E-6 : f32
    %14 = vector.broadcast %cst_4 : f32 to vector<1x32xf32>
    %15 = arith.addf %11, %14 : vector<1x32xf32>
    %16 = math.rsqrt %15 : vector<1x32xf32>
    %17 = vector.broadcast %16 : vector<1x32xf32> to vector<147x32xf32>
    %18 = arith.mulf %13, %17 : vector<147x32xf32>
    %19 = arith.truncf %18 : vector<147x32xf32> to vector<147x32xbf16>
    %c0_5 = arith.constant 0 : index
    %c0_6 = arith.constant 0 : index
    %20 = vector.load %arg1[%c0_5, %c0_6] : memref<147x32xbf16, #tpu.memory_space<vmem>>, vector<147x32xbf16>
    tpu.vector_store %arg1[%c0_5, %c0_6], %19 {strides = array<i32>} : memref<147x32xbf16, #tpu.memory_space<vmem>>, vector<147x32xbf16>,
    return
  }
}

</mosaic_0001>

<llo_original>
// kernel: tpu_custom_call.1
$region0: #{tpu_custom_call.1}
  #allocation0 [shape = 'u32[]', space=smem, size = 0x4, offset = 0x4, fixed_abs, tag = 'smem constant byte address 0x4 - core index']
  #allocation1 [shape = 'u32[72,128]{1,0:T(1,128)}', space=vmem, size = 0x9000, scoped, tag = 'internal scratch']
  %s0 = inlined_call_operand.vmem [shape: f32[147,32], index: 0, kind: input, shape index: {}]
  %s1 = inlined_call_operand.vmem [shape: bf16[147,32], index: 1, kind: output, shape index: {}]
  %s2 = sld [smem:[#allocation0]]
  $region14: #{tpu_custom_call.1} parent=0
    _
  %s4 = ssub.s32 1, %s2
  %s5 = scalar_select 0, %s4, %s2
  // Predicated region
  $region2: #{tpu_custom_call.1} parent=0 // pred_check
    _
  $region3: #{tpu_custom_call.1} parent=0 // pred_check_branch
    %7 = sbr.rel (0) target = $region5
  $region4: #{tpu_custom_call.1} parent=0 // pred_region
    _
  $region5: #{tpu_custom_call.1} parent=0 // pred_fallthru
    _
  %v8 = vld [vmem:[%s0] sm:$0xff]
  %v9 = vld [vmem:[%s0 + $0x8] sm:$0xff]
  %v10 = vld [vmem:[%s0 + $0x10] sm:$0xff]
  %v11 = vld [vmem:[%s0 + $0x18] sm:$0xff]
  %v12 = vld [vmem:[%s0 + $0x20] sm:$0xff]
  %v13 = vld [vmem:[%s0 + $0x28] sm:$0xff]
  %v14 = vld [vmem:[%s0 + $0x30] sm:$0xff]
  %v15 = vld [vmem:[%s0 + $0x38] sm:$0xff]
  %v16 = vld [vmem:[%s0 + $0x40] sm:$0xff]
  %v17 = vld [vmem:[%s0 + $0x48] sm:$0xff]
  %v18 = vld [vmem:[%s0 + $0x50] sm:$0xff]
  %v19 = vld [vmem:[%s0 + $0x58] sm:$0xff]
  %v20 = vld [vmem:[%s0 + $0x60] sm:$0xff]
  %v21 = vld [vmem:[%s0 + $0x68] sm:$0xff]
  %v22 = vld [vmem:[%s0 + $0x70] sm:$0xff]
  %v23 = vld [vmem:[%s0 + $0x78] sm:$0xff]
  %v24 = vld [vmem:[%s0 + $0x80] sm:$0xff]
  %v25 = vld [vmem:[%s0 + $0x88] sm:$0xff]
  %v26 = vld [vmem:[%s0 + $0x90] sm:$0x7]
  %vm27 = vcmask 261120
  %v28 = vsel %vm27, %v8, 0.0
  %v29 = vsel %vm27, %v9, 0.0
  %v30 = vadd.f32 %v28, %v29
  %v31 = vsel %vm27, %v10, 0.0
  %v32 = vadd.f32 %v30, %v31
  %v33 = vsel %vm27, %v11, 0.0
  %v34 = vadd.f32 %v32, %v33
  %v35 = vsel %vm27, %v12, 0.0
  %v36 = vadd.f32 %v34, %v35
  %v37 = vsel %vm27, %v13, 0.0
  %v38 = vadd.f32 %v36, %v37
  %v39 = vsel %vm27, %v14, 0.0
  %v40 = vadd.f32 %v38, %v39
  %v41 = vsel %vm27, %v15, 0.0
  %v42 = vadd.f32 %v40, %v41
  %v43 = vsel %vm27, %v16, 0.0
  %v44 = vadd.f32 %v42, %v43
  %v45 = vsel %vm27, %v17, 0.0
  %v46 = vadd.f32 %v44, %v45
  %v47 = vsel %vm27, %v18, 0.0
  %v48 = vadd.f32 %v46, %v47
  %v49 = vsel %vm27, %v19, 0.0
  %v50 = vadd.f32 %v48, %v49
  %v51 = vsel %vm27, %v20, 0.0
  %v52 = vadd.f32 %v50, %v51
  %v53 = vsel %vm27, %v21, 0.0
  %v54 = vadd.f32 %v52, %v53
  %v55 = vsel %vm27, %v22, 0.0
  %v56 = vadd.f32 %v54, %v55
  %v57 = vsel %vm27, %v23, 0.0
  %v58 = vadd.f32 %v56, %v57
  %v59 = vsel %vm27, %v24, 0.0
  %v60 = vadd.f32 %v58, %v59
  %v61 = vsel %vm27, %v25, 0.0
  %v62 = vadd.f32 %v60, %v61
  %vm63 = vcmask 256000
  %v64 = vsel %vm63, %v26, 0.0
  %v65 = vadd.f32 %v62, %v64
  %v66 = vrot.slane %v65, 4
  %v67 = vadd.f32 %v65, %v66
  %v68 = vrot.slane %v67, 2
  %v69 = vadd.f32 %v67, %v68
  %v70 = vrot.slane %v69, 1
  %v71 = vadd.f32 %v69, %v70
  %v72 = vrcp.pop 147.0
  %v73 = vmul.f32 147.0, %v72
  %v74 = vsub.f32 1.0, %v73
  %v75 = vmul.f32 %v72, %v74
  %v76 = vadd.f32 %v72, %v75
  %vm77 = vweird.f32 %v72
  %v78 = vsel %vm77, %v72, %v76
  %v79 = vmul.f32 %v71, %v78
  %v80 = vmul.f32 %v8, %v8
  %v81 = vmul.f32 %v9, %v9
  %v82 = vmul.f32 %v10, %v10
  %v83 = vmul.f32 %v11, %v11
  %v84 = vmul.f32 %v12, %v12
  %v85 = vmul.f32 %v13, %v13
  %v86 = vmul.f32 %v14, %v14
  %v87 = vmul.f32 %v15, %v15
  %v88 = vmul.f32 %v16, %v16
  %v89 = vmul.f32 %v17, %v17
  %v90 = vmul.f32 %v18, %v18
  %v91 = vmul.f32 %v19, %v19
  %v92 = vmul.f32 %v20, %v20
  %v93 = vmul.f32 %v21, %v21
  %v94 = vmul.f32 %v22, %v22
  %v95 = vmul.f32 %v23, %v23
  %v96 = vmul.f32 %v24, %v24
  %v97 = vmul.f32 %v25, %v25
  %v98 = vmul.f32 %v26, %v26
  %v99 = vsel %vm27, %v80, 0.0
  %v100 = vsel %vm27, %v81, 0.0
  %v101 = vadd.f32 %v99, %v100
  %v102 = vsel %vm27, %v82, 0.0
  %v103 = vadd.f32 %v101, %v102
  %v104 = vsel %vm27, %v83, 0.0
  %v105 = vadd.f32 %v103, %v104
  %v106 = vsel %vm27, %v84, 0.0
  %v107 = vadd.f32 %v105, %v106
  %v108 = vsel %vm27, %v85, 0.0
  %v109 = vadd.f32 %v107, %v108
  %v110 = vsel %vm27, %v86, 0.0
  %v111 = vadd.f32 %v109, %v110
  %v112 = vsel %vm27, %v87, 0.0
  %v113 = vadd.f32 %v111, %v112
  %v114 = vsel %vm27, %v88, 0.0
  %v115 = vadd.f32 %v113, %v114
  %v116 = vsel %vm27, %v89, 0.0
  %v117 = vadd.f32 %v115, %v116
  %v118 = vsel %vm27, %v90, 0.0
  %v119 = vadd.f32 %v117, %v118
  %v120 = vsel %vm27, %v91, 0.0
  %v121 = vadd.f32 %v119, %v120
  %v122 = vsel %vm27, %v92, 0.0
  %v123 = vadd.f32 %v121, %v122
  %v124 = vsel %vm27, %v93, 0.0
  %v125 = vadd.f32 %v123, %v124
  %v126 = vsel %vm27, %v94, 0.0
  %v127 = vadd.f32 %v125, %v126
  %v128 = vsel %vm27, %v95, 0.0
  %v129 = vadd.f32 %v127, %v128
  %v130 = vsel %vm27, %v96, 0.0
  %v131 = vadd.f32 %v129, %v130
  %v132 = vsel %vm27, %v97, 0.0
  %v133 = vadd.f32 %v131, %v132
  %v134 = vsel %vm63, %v98, 0.0
  %v135 = vadd.f32 %v133, %v134
  %v136 = vrot.slane %v135, 4
  %v137 = vadd.f32 %v135, %v136
  %v138 = vrot.slane %v137, 2
  %v139 = vadd.f32 %v137, %v138
  %v140 = vrot.slane %v139, 1
  %v141 = vadd.f32 %v139, %v140
  %v142 = vmul.f32 %v141, %v78
  %v143 = vmul.f32 %v79, %v79
  %v144 = vsub.f32 %v142, %v143
  %v145 = vsub.f32 %v8, %v79
  %v146 = vsub.f32 %v9, %v79
  %v147 = vsub.f32 %v10, %v79
  %v148 = vsub.f32 %v11, %v79
  %v149 = vsub.f32 %v12, %v79
  %v150 = vsub.f32 %v13, %v79
  %v151 = vsub.f32 %v14, %v79
  %v152 = vsub.f32 %v15, %v79
  %v153 = vsub.f32 %v16, %v79
  %v154 = vsub.f32 %v17, %v79
  %v155 = vsub.f32 %v18, %v79
  %v156 = vsub.f32 %v19, %v79
  %v157 = vsub.f32 %v20, %v79
  %v158 = vsub.f32 %v21, %v79
  %v159 = vsub.f32 %v22, %v79
  %v160 = vsub.f32 %v23, %v79
  %v161 = vsub.f32 %v24, %v79
  %v162 = vsub.f32 %v25, %v79
  %v163 = vsub.f32 %v26, %v79
  %v164 = vadd.f32 %v144, 1e-05
  %v165 = vrsqrt.pop %v164
  %v166 = vmul.f32 %v165, %v164
  %v167 = vmul.f32 %v166, %v165
  %v168 = vmul.f32 0.5, %v167
  %v169 = vsub.f32 1.5, %v168
  %v170 = vmul.f32 %v165, %v169
  %vm171 = vweird.f32 %v164
  %vm172 = vweird.f32 %v165
  %vm173 = vmor %vm171, %vm172
  %v174 = vsel %vm173, %v165, %v170
  %v175 = vmul.f32 %v145, %v174
  %v176 = vmul.f32 %v146, %v174
  %v177 = vmul.f32 %v147, %v174
  %v178 = vmul.f32 %v148, %v174
  %v179 = vmul.f32 %v149, %v174
  %v180 = vmul.f32 %v150, %v174
  %v181 = vmul.f32 %v151, %v174
  %v182 = vmul.f32 %v152, %v174
  %v183 = vmul.f32 %v153, %v174
  %v184 = vmul.f32 %v154, %v174
  %v185 = vmul.f32 %v155, %v174
  %v186 = vmul.f32 %v156, %v174
  %v187 = vmul.f32 %v157, %v174
  %v188 = vmul.f32 %v158, %v174
  %v189 = vmul.f32 %v159, %v174
  %v190 = vmul.f32 %v160, %v174
  %v191 = vmul.f32 %v161, %v174
  %v192 = vmul.f32 %v162, %v174
  %v193 = vmul.f32 %v163, %v174
  %v194 = vpack.c.bf16 %v175, %v175
  %v195 = vpack.c.bf16 %v176, %v176
  %v196 = vpack.c.bf16 %v177, %v177
  %v197 = vpack.c.bf16 %v178, %v178
  %v198 = vpack.c.bf16 %v179, %v179
  %v199 = vpack.c.bf16 %v180, %v180
  %v200 = vpack.c.bf16 %v181, %v181
  %v201 = vpack.c.bf16 %v182, %v182
  %v202 = vpack.c.bf16 %v183, %v183
  %v203 = vpack.c.bf16 %v184, %v184
  %v204 = vpack.c.bf16 %v185, %v185
  %v205 = vpack.c.bf16 %v186, %v186
  %v206 = vpack.c.bf16 %v187, %v187
  %v207 = vpack.c.bf16 %v188, %v188
  %v208 = vpack.c.bf16 %v189, %v189
  %v209 = vpack.c.bf16 %v190, %v190
  %v210 = vpack.c.bf16 %v191, %v191
  %v211 = vpack.c.bf16 %v192, %v192
  %v212 = vpack.c.bf16 %v193, %v193
  %vm213 = vcmask 257024
  %214 = vst.msk [vmem:[%s1] sm:$0xf] %vm213, %v194
  %215 = vst.msk [vmem:[%s1 + $0x4] sm:$0xf] %vm213, %v195
  %216 = vst.msk [vmem:[%s1 + $0x8] sm:$0xf] %vm213, %v196
  %217 = vst.msk [vmem:[%s1 + $0xc] sm:$0xf] %vm213, %v197
  %218 = vst.msk [vmem:[%s1 + $0x10] sm:$0xf] %vm213, %v198
  %219 = vst.msk [vmem:[%s1 + $0x14] sm:$0xf] %vm213, %v199
  %220 = vst.msk [vmem:[%s1 + $0x18] sm:$0xf] %vm213, %v200
  %221 = vst.msk [vmem:[%s1 + $0x1c] sm:$0xf] %vm213, %v201
  %222 = vst.msk [vmem:[%s1 + $0x20] sm:$0xf] %vm213, %v202
  %223 = vst.msk [vmem:[%s1 + $0x24] sm:$0xf] %vm213, %v203
  %224 = vst.msk [vmem:[%s1 + $0x28] sm:$0xf] %vm213, %v204
  %225 = vst.msk [vmem:[%s1 + $0x2c] sm:$0xf] %vm213, %v205
  %226 = vst.msk [vmem:[%s1 + $0x30] sm:$0xf] %vm213, %v206
  %227 = vst.msk [vmem:[%s1 + $0x34] sm:$0xf] %vm213, %v207
  %228 = vst.msk [vmem:[%s1 + $0x38] sm:$0xf] %vm213, %v208
  %229 = vst.msk [vmem:[%s1 + $0x3c] sm:$0xf] %vm213, %v209
  %230 = vst.msk [vmem:[%s1 + $0x40] sm:$0xf] %vm213, %v210
  %231 = vst.msk [vmem:[%s1 + $0x44] sm:$0xf] %vm213, %v211
  %vm232 = vcmask 254976
  %vm233 = vsmask.f32 1280
  %vm234 = vmand %vm232, %vm233
  %v235 = vld [vmem:[%s1 + $0x48] sm:$0x3]
  %v236 = vsel %vm234, %v212, %v235
  %237 = vst [vmem:[%s1 + $0x48] sm:$0x3] %v236
  // Predicated region
  $region6: #{tpu_custom_call.1} parent=0 // pred_check
    _
  $region7: #{tpu_custom_call.1} parent=0 // pred_check_branch
    %239 = sbr.rel (0) target = $region9
  $region8: #{tpu_custom_call.1} parent=0 // pred_region
    _
  $region9: #{tpu_custom_call.1} parent=0 // pred_fallthru
    _
  // Predicated region
  $region10: #{tpu_custom_call.1} parent=0 // pred_check
    _
  $region11: #{tpu_custom_call.1} parent=0 // pred_check_branch
    %241 = sbr.rel (0) target = $region13
  $region12: #{tpu_custom_call.1} parent=0 // pred_region
    _
  $region13: #{tpu_custom_call.1} parent=0 // pred_fallthru
    _

</llo_original>
